<compile_context>
chip_gen: v6e
topology: v6e:2x2x1
jax: 0.10.0
libtpu: 0.0.40
codegen_flags: <defaults>
</compile_context>

<pallas_src>
import math
from functools import partial

import jax
import jax.numpy as jnp
from jax import lax
from jax.experimental import pallas as pl
from jax.experimental.pallas import tpu as pltpu


def _round_up(x, m):
    return (x + m - 1) // m * m


def conv_gn_relu_kernel(patch_ref, w_ref, gamma_ref, beta_ref, o_ref, *, inv_count):
    # patch_ref: (1, K_pad, P_pad)  one sample's im2col matrix (zero-padded)
    # w_ref:     (OC_pad, K_pad)    conv weight (zero-padded)
    # gamma_ref: (OC_pad, 1)        group-norm scale (column vector)
    # beta_ref:  (OC_pad, 1)        group-norm shift (column vector)
    # o_ref:     (1, OC_pad, P_pad)
    x = patch_ref[0]                                             # (K_pad, P_pad)
    w = w_ref[...]                                               # (OC_pad, K_pad)
    # MXU: contraction over K_pad, lane-dense output dim = P_pad.
    y = jnp.dot(w, x, preferred_element_type=jnp.float32)        # (OC_pad, P_pad)

    # group_norm(num_groups=1): stats over all real OC*P elements of the sample.
    # Padded rows/cols of y are exactly zero (zero-padded weights/patches), so
    # they contribute nothing to the sums; divide by the real element count.
    s1 = jnp.sum(y)
    s2 = jnp.sum(y * y)
    mean = s1 * inv_count
    var = s2 * inv_count - mean * mean                           # biased (matches torch)
    eps = 1e-5

    # Fused per-channel scale/bias (single mul-add-relu pass over the tile).
    a = gamma_ref[...] * lax.rsqrt(var + eps)                    # (OC_pad, 1)
    b = beta_ref[...] - mean * a                                 # (OC_pad, 1)
    o_ref[0] = jnp.maximum(y * a + b, 0.0).astype(o_ref.dtype)


def conv2d_block_forward(x, weight, gamma, beta, *, stride=1, padding=0):
    """x: (N, C, H, W) float32; weight: (OC, C, KH, KW); gamma/beta: (OC,)."""
    N, C, H, W = x.shape
    OC, _, KH, KW = weight.shape
    OH = (H + 2 * padding - KH) // stride + 1
    OW = (W + 2 * padding - KW) // stride + 1
    P = OH * OW
    K = C * KH * KW

    # Padded (TPU-aligned) dims.
    K_pad = _round_up(K, 128)    # contraction dim (lane dim of W, sublane dim of patches)
    P_pad = _round_up(P, 128)    # lane dim of the output
    OC_pad = _round_up(OC, 8)    # sublane dim of the output

    # ---- glue: im2col emitted directly in (N, K, P) order (no transpose) ----
    # K ordering = c-major, then kh, kw -- matches PyTorch weight (OC, C, KH, KW).
    xp = jnp.pad(x, ((0, 0), (0, 0), (padding, padding), (padding, padding)))
    slices = []
    for kh in range(KH):
        for kw in range(KW):
            slices.append(
                xp[:, :, kh:kh + stride * OH:stride, kw:kw + stride * OW:stride]
            )  # (N, C, OH, OW)
    patches = jnp.stack(slices, axis=2).reshape(N, K, P)          # (N, K, P)
    patches = jnp.pad(patches, ((0, 0), (0, K_pad - K), (0, P_pad - P)))
    patches = patches.astype(jnp.float32)
    # TODO(synk): for large H*W / C, add a P-tiling grid axis (two-pass stats) and
    # cast MXU operands to bf16 on v6e/v7x; whole-sample f32 blocks are fine here.

    w_mat = weight.reshape(OC, K).astype(jnp.float32)             # (OC, K)
    w_mat = jnp.pad(w_mat, ((0, OC_pad - OC), (0, K_pad - K)))    # (OC_pad, K_pad)
    gamma2 = jnp.pad(gamma.astype(jnp.float32), (0, OC_pad - OC)).reshape(OC_pad, 1)
    beta2 = jnp.pad(beta.astype(jnp.float32), (0, OC_pad - OC)).reshape(OC_pad, 1)

    kernel = partial(conv_gn_relu_kernel, inv_count=1.0 / float(OC * P))

    out = pl.pallas_call(
        kernel,
        out_shape=jax.ShapeDtypeStruct((N, OC_pad, P_pad), jnp.float32),
        grid_spec=pltpu.PrefetchScalarGridSpec(
            num_scalar_prefetch=0,
            grid=(N,),
            in_specs=[
                pl.BlockSpec((1, K_pad, P_pad), lambda n: (n, 0, 0)),
                pl.BlockSpec((OC_pad, K_pad), lambda n: (0, 0)),
                pl.BlockSpec((OC_pad, 1), lambda n: (0, 0)),
                pl.BlockSpec((OC_pad, 1), lambda n: (0, 0)),
            ],
            out_specs=pl.BlockSpec((1, OC_pad, P_pad), lambda n: (n, 0, 0)),
        ),
        compiler_params=pltpu.CompilerParams(
            dimension_semantics=("parallel",),   # N samples -> both TCs on v7x
        ),
    )(patches, w_mat, gamma2, beta2)

    # (N, OC_pad, P_pad) -> (N, OC, OH, OW); output is already channel-major.
    return out[:, :OC, :P].reshape(N, OC, OH, OW)


def reference_forward(x, weight, gamma, beta, *, stride=1, padding=0):
    """Pure-JAX reference: conv (no bias) -> group_norm(1 group) -> relu."""
    y = lax.conv_general_dilated(
        x, weight,
        window_strides=(stride, stride),
        padding=[(padding, padding), (padding, padding)],
        dimension_numbers=("NCHW", "OIHW", "NCHW"),
    )
    mean = jnp.mean(y, axis=(1, 2, 3), keepdims=True)
    var = jnp.var(y, axis=(1, 2, 3), keepdims=True)
    y_hat = (y - mean) / jnp.sqrt(var + 1e-5)
    y_hat = y_hat * gamma[None, :, None, None] + beta[None, :, None, None]
    return jnp.maximum(y_hat, 0.0)


if __name__ == "__main__":
    # Conv2dBlock(in_channels=4, out_channels=8, kernel_size=3, stride=1, padding=1)
    N, C, H, W = 2, 4, 16, 16
    OC, KH, KW = 8, 3, 3
    stride, padding = 1, 1

    key = jax.random.PRNGKey(0)
    kx, kw = jax.random.split(key)

    x = jax.random.normal(kx, (N, C, H, W), dtype=jnp.float32)

    # kaiming_uniform_(nonlinearity='relu'): U(-b, b), b = sqrt(6 / fan_in)
    fan_in = C * KH * KW
    bound = math.sqrt(6.0 / fan_in)
    conv_w = jax.random.uniform(
        kw, (OC, C, KH, KW), dtype=jnp.float32, minval=-bound, maxval=bound
    )
    gamma = jnp.ones((OC,), dtype=jnp.float32)   # self.weight = ones(out_channels)
    beta = jnp.zeros((OC,), dtype=jnp.float32)   # self.bias   = zeros(out_channels)

    out = conv2d_block_forward(x, conv_w, gamma, beta, stride=stride, padding=padding)
    out = jax.block_until_ready(out)

    ref = reference_forward(x, conv_w, gamma, beta, stride=stride, padding=padding)
    assert out.shape == (N, OC, H, W)
    assert jnp.allclose(out, ref, atol=1e-3, rtol=1e-3), "mismatch vs reference"

    print("KERNEL_OK")
</pallas_src>

<mosaic_0001>
module attributes {stable_mosaic.version = 11 : i64} {
  func.func @conv_gn_relu_kernel(%arg0: i32, %arg1: memref<1x128x256xf32, #tpu.memory_space<vmem>>, %arg2: memref<8x128xf32, #tpu.memory_space<vmem>>, %arg3: memref<8x1xf32, #tpu.memory_space<vmem>>, %arg4: memref<8x1xf32, #tpu.memory_space<vmem>>, %arg5: memref<1x8x256xf32, #tpu.memory_space<vmem>>) attributes {dimension_semantics = [#tpu.dimension_semantics<parallel>], iteration_bounds = array<i64: 2>, scalar_prefetch = 0 : i64, scratch_operands = 0 : i64, tpu.core_type = #tpu.core_type<tc>, window_params = [{transform_indices = @transform_0, window_bounds = array<i64: 1, 128, 256>}, {pipeline_mode = #tpu.pipeline_mode<synchronous>, transform_indices = @transform_1, window_bounds = array<i64: 8, 128>}, {pipeline_mode = #tpu.pipeline_mode<synchronous>, transform_indices = @transform_2, window_bounds = array<i64: 8, 1>}, {pipeline_mode = #tpu.pipeline_mode<synchronous>, transform_indices = @transform_3, window_bounds = array<i64: 8, 1>}, {transform_indices = @transform_4, window_bounds = array<i64: 1, 8, 256>}]} {
    %c0 = arith.constant 0 : index
    %c0_0 = arith.constant 0 : index
    %c0_1 = arith.constant 0 : index
    %0 = vector.load %arg1[%c0, %c0_0, %c0_1] : memref<1x128x256xf32, #tpu.memory_space<vmem>>, vector<1x128x256xf32>
    %1 = vector.shape_cast %0 : vector<1x128x256xf32> to vector<128x256xf32>
    %c0_2 = arith.constant 0 : index
    %c0_3 = arith.constant 0 : index
    %2 = vector.load %arg2[%c0_2, %c0_3] : memref<8x128xf32, #tpu.memory_space<vmem>>, vector<8x128xf32>
    %cst = arith.constant dense<0.000000e+00> : vector<8x256xf32>
    %3 = tpu.matmul %2, %1, %cst {dimension_numbers = #tpu.dot_dimension_numbers<[1], [0], [0], [1], [0, 0, 1, 1], [], []>} : vector<8x128xf32>, vector<128x256xf32>, vector<8x256xf32> -> vector<8x256xf32>
    %4 = vector.shape_cast %3 : vector<8x256xf32> to vector<1x8x256xf32>
    %cst_4 = arith.constant dense<0.000000e+00> : vector<1xf32>
    %5 = vector.multi_reduction <add>, %4, %cst_4 [1, 2] : vector<1x8x256xf32> to vector<1xf32>
    %6 = vector.shape_cast %5 : vector<1xf32> to vector<1x1x1xf32>
    %7 = vector.extract %6[0, 0, 0] : f32 from vector<1x1x1xf32>
    %8 = arith.mulf %3, %3 : vector<8x256xf32>
    %9 = vector.shape_cast %8 : vector<8x256xf32> to vector<1x8x256xf32>
    %cst_5 = arith.constant dense<0.000000e+00> : vector<1xf32>
    %10 = vector.multi_reduction <add>, %9, %cst_5 [1, 2] : vector<1x8x256xf32> to vector<1xf32>
    %11 = vector.shape_cast %10 : vector<1xf32> to vector<1x1x1xf32>
    %12 = vector.extract %11[0, 0, 0] : f32 from vector<1x1x1xf32>
    %cst_6 = arith.constant 4.8828125E-4 : f32
    %13 = arith.mulf %7, %cst_6 : f32
    %cst_7 = arith.constant 4.8828125E-4 : f32
    %14 = arith.mulf %12, %cst_7 : f32
    %15 = arith.mulf %13, %13 : f32
    %16 = arith.subf %14, %15 : f32
    %c0_8 = arith.constant 0 : index
    %c0_9 = arith.constant 0 : index
    %17 = vector.load %arg3[%c0_8, %c0_9] : memref<8x1xf32, #tpu.memory_space<vmem>>, vector<8x1xf32>
    %cst_10 = arith.constant 9.99999974E-6 : f32
    %18 = arith.addf %16, %cst_10 : f32
    %19 = math.rsqrt %18 : f32
    %20 = vector.broadcast %19 : f32 to vector<8x1xf32>
    %21 = arith.mulf %17, %20 : vector<8x1xf32>
    %c0_11 = arith.constant 0 : index
    %c0_12 = arith.constant 0 : index
    %22 = vector.load %arg4[%c0_11, %c0_12] : memref<8x1xf32, #tpu.memory_space<vmem>>, vector<8x1xf32>
    %23 = vector.broadcast %13 : f32 to vector<8x1xf32>
    %24 = arith.mulf %23, %21 : vector<8x1xf32>
    %25 = arith.subf %22, %24 : vector<8x1xf32>
    %26 = vector.broadcast %21 : vector<8x1xf32> to vector<8x256xf32>
    %27 = arith.mulf %3, %26 : vector<8x256xf32>
    %28 = vector.broadcast %25 : vector<8x1xf32> to vector<8x256xf32>
    %29 = arith.addf %27, %28 : vector<8x256xf32>
    %cst_13 = arith.constant 0.000000e+00 : f32
    %30 = vector.broadcast %cst_13 : f32 to vector<8x256xf32>
    %31 = arith.maximumf %29, %30 : vector<8x256xf32>
    %c0_14 = arith.constant 0 : index
    %c0_15 = arith.constant 0 : index
    %c0_16 = arith.constant 0 : index
    %32 = vector.load %arg5[%c0_14, %c0_15, %c0_16] : memref<1x8x256xf32, #tpu.memory_space<vmem>>, vector<1x8x256xf32>
    %33 = vector.shape_cast %32 : vector<1x8x256xf32> to vector<8x256xf32>
    %34 = vector.shape_cast %31 : vector<8x256xf32> to vector<1x8x256xf32>
    tpu.vector_store %arg5[%c0_14, %c0_15, %c0_16], %34 {strides = array<i32>} : memref<1x8x256xf32, #tpu.memory_space<vmem>>, vector<1x8x256xf32>,
    return
  }
  func.func @transform_0(%arg0: i32) -> (i32, i32, i32) {
    %c0_i32 = arith.constant 0 : i32
    %c0_i32_0 = arith.constant 0 : i32
    %c0_i32_1 = arith.constant 0 : i32
    return %arg0, %c0_i32, %c0_i32_0 : i32, i32, i32
  }
  func.func @transform_1(%arg0: i32) -> (i32, i32) {
    %c0_i32 = arith.constant 0 : i32
    %c0_i32_0 = arith.constant 0 : i32
    %c0_i32_1 = arith.constant 0 : i32
    return %c0_i32, %c0_i32_0 : i32, i32
  }
  func.func @transform_2(%arg0: i32) -> (i32, i32) {
    %c0_i32 = arith.constant 0 : i32
    %c0_i32_0 = arith.constant 0 : i32
    %c0_i32_1 = arith.constant 0 : i32
    return %c0_i32, %c0_i32_0 : i32, i32
  }
  func.func @transform_3(%arg0: i32) -> (i32, i32) {
    %c0_i32 = arith.constant 0 : i32
    %c0_i32_0 = arith.constant 0 : i32
    %c0_i32_1 = arith.constant 0 : i32
    return %c0_i32, %c0_i32_0 : i32, i32
  }
  func.func @transform_4(%arg0: i32) -> (i32, i32, i32) {
    %c0_i32 = arith.constant 0 : i32
    %c0_i32_0 = arith.constant 0 : i32
    %c0_i32_1 = arith.constant 0 : i32
    return %arg0, %c0_i32, %c0_i32_0 : i32, i32, i32
  }
}

</mosaic_0001>

<llo_original>
// kernel: tpu_custom_call.1
$region0: #{tpu_custom_call.1}
  #allocation0 [shape = 'u32[]', space=smem, size = 0x4, offset = 0x4, fixed_abs, tag = 'smem constant byte address 0x4 - core index']
  #allocation1 [shape = 'u32[144,128]{1,0:T(1,128)}', space=vmem, size = 0x12000, scoped, tag = 'internal scratch']
  %s0 = inlined_call_operand.hbm [shape: f32[2,128,256], index: 0, kind: input, shape index: {}]
  %s1 = inlined_call_operand.vmem [shape: f32[8,128], index: 1, kind: input, shape index: {}]
  %s2 = inlined_call_operand.vmem [shape: f32[8,1], index: 2, kind: input, shape index: {}]
  %s3 = inlined_call_operand.vmem [shape: f32[8,1], index: 3, kind: input, shape index: {}]
  %s4 = inlined_call_operand.hbm [shape: f32[2,8,256], index: 4, kind: output, shape index: {}]
  %s5 = sld [smem:[#allocation0]]
  $region53: #{tpu_custom_call.1} parent=0
    _
  %s7 = ssub.s32 1, %s5
  %s8 = scalar_select 0, %s7, %s5
  $region1: #{tpu_custom_call.1} parent=0
    #allocation2 [shape = 'u8[262144]{0}', space=vmem, size = 0x40000, scoped, tag = 'input window, operand 0']
    #allocation3 [shape = 's32[2]{0}', space=sflag, size = 0x8, scoped, tag = 'scoped memory for tpu_custom_call.1']
    #allocation4 [shape = 's32[2]{0}', space=sflag, size = 0x8, scoped, tag = 'scoped memory for tpu_custom_call.1']
    #allocation5 [shape = 'u8[16384]{0}', space=vmem, size = 0x4000, scoped, tag = 'output window, operand 0']
    %9 = vsyncpa [#allocation3], 0
    %s10 = scalar_lea.sflag [#allocation3], 1
    %11 = vsyncpa %s10, 0
    %12 = vsyncpa [#allocation4], 0
    %s13 = scalar_lea.sflag [#allocation4], 1
    %14 = vsyncpa %s13, 0
    loop: start=0, step=1, limit=4
    $region2: #{tpu_custom_call.1} parent=1 // loop_pre_header
      _
    $region3: #{tpu_custom_call.1} parent=1 // loop_header
      %s16 = sphi 0, %s20
      %p17 = scmp.ge.s32.totalorder %s16, 4
      %s26 = sphi 0, %s28
      %s29 = sphi 0, %s26
      %s30 = sphi 0, %s29
      %s46 = sphi 0, %s30
      %s50 = sphi 0, %s50
      %s52 = sphi 0, %s50
      %s53 = sphi 0, %s52
      %s67 = sphi 0, %s53
      %s71 = sphi 0, %s71
      %s73 = sphi 0, %s71
      %s74 = sphi 0, %s73
      %s88 = sphi 0, %s74
      %s92 = sphi 0, %s92
      %s94 = sphi 0, %s92
      %s95 = sphi 0, %s94
      %s109 = sphi 0, %s95
      %s115 = sphi 0, %s117
      %s118 = sphi 0, %s115
      %s119 = sphi 0, %s118
      %s135 = sphi 0, %s119
    $region4: #{tpu_custom_call.1} parent=1 // loop_header_branch
      %19 = sbr.rel (%p17) target = $region8
    $region5: #{tpu_custom_call.1} parent=1 // loop_body
      %s21 = ssub.s32 %s16, 1
      %s22 = ssub.s32 %s16, 2
      %s23 = sadd.s32 %s16, 1
      %s24 = ssub.s32 %s16, %s23
      %p25 = scmp.eq.s32.totalorder %s24, 0
      %s27 = sadd.s32 %s26, 1
      %s28 = scalar_select %p25, %s26, %s27
      %p31 = pneg %p25
      %p32 = scmp.eq.s32.totalorder %s16, 1
      %p33 = por %p31, %p32
      %p34 = scmp.ne.s32.totalorder %s26, %s29
      %p35 = scmp.eq.s32.totalorder %s16, 0
      %p36 = por %p34, %p35
      %p37 = scmp.ne.s32.totalorder %s26, %s29
      %p38 = scmp.eq.s32.totalorder %s21, 1
      %p39 = por %p37, %p38
      %p40 = scmp.ne.s32.totalorder %s29, %s30
      %p41 = scmp.eq.s32.totalorder %s21, 0
      %p42 = por %p40, %p41
      %p43 = scmp.ne.s32.totalorder %s29, %s30
      %p44 = scmp.eq.s32.totalorder %s22, 1
      %p45 = por %p43, %p44
      %p47 = scmp.ne.s32.totalorder %s30, %s46
      %p48 = scmp.eq.s32.totalorder %s22, 0
      %p49 = por %p47, %p48
      %s51 = sadd.s32 %s50, 1
      %p54 = scmp.eq.s32.totalorder %s16, 1
      %p55 = scmp.ne.s32.totalorder %s50, %s52
      %p56 = scmp.eq.s32.totalorder %s16, 0
      %p57 = por %p55, %p56
      %p58 = scmp.ne.s32.totalorder %s50, %s52
      %p59 = scmp.eq.s32.totalorder %s21, 1
      %p60 = por %p58, %p59
      %p61 = scmp.ne.s32.totalorder %s52, %s53
      %p62 = scmp.eq.s32.totalorder %s21, 0
      %p63 = por %p61, %p62
      %p64 = scmp.ne.s32.totalorder %s52, %s53
      %p65 = scmp.eq.s32.totalorder %s22, 1
      %p66 = por %p64, %p65
      %p68 = scmp.ne.s32.totalorder %s53, %s67
      %p69 = scmp.eq.s32.totalorder %s22, 0
      %p70 = por %p68, %p69
      %s72 = sadd.s32 %s71, 1
      %p75 = scmp.eq.s32.totalorder %s16, 1
      %p76 = scmp.ne.s32.totalorder %s71, %s73
      %p77 = scmp.eq.s32.totalorder %s16, 0
      %p78 = por %p76, %p77
      %p79 = scmp.ne.s32.totalorder %s71, %s73
      %p80 = scmp.eq.s32.totalorder %s21, 1
      %p81 = por %p79, %p80
      %p82 = scmp.ne.s32.totalorder %s73, %s74
      %p83 = scmp.eq.s32.totalorder %s21, 0
      %p84 = por %p82, %p83
      %p85 = scmp.ne.s32.totalorder %s73, %s74
      %p86 = scmp.eq.s32.totalorder %s22, 1
      %p87 = por %p85, %p86
      %p89 = scmp.ne.s32.totalorder %s74, %s88
      %p90 = scmp.eq.s32.totalorder %s22, 0
      %p91 = por %p89, %p90
      %s93 = sadd.s32 %s92, 1
      %p96 = scmp.eq.s32.totalorder %s16, 1
      %p97 = scmp.ne.s32.totalorder %s92, %s94
      %p98 = scmp.eq.s32.totalorder %s16, 0
      %p99 = por %p97, %p98
      %p100 = scmp.ne.s32.totalorder %s92, %s94
      %p101 = scmp.eq.s32.totalorder %s21, 1
      %p102 = por %p100, %p101
      %p103 = scmp.ne.s32.totalorder %s94, %s95
      %p104 = scmp.eq.s32.totalorder %s21, 0
      %p105 = por %p103, %p104
      %p106 = scmp.ne.s32.totalorder %s94, %s95
      %p107 = scmp.eq.s32.totalorder %s22, 1
      %p108 = por %p106, %p107
      %p110 = scmp.ne.s32.totalorder %s95, %s109
      %p111 = scmp.eq.s32.totalorder %s22, 0
      %p112 = por %p110, %p111
      %s113 = ssub.s32 %s16, %s23
      %p114 = scmp.eq.s32.totalorder %s113, 0
      %s116 = sadd.s32 %s115, 1
      %s117 = scalar_select %p114, %s115, %s116
      %p120 = pneg %p114
      %p121 = scmp.eq.s32.totalorder %s16, 1
      %p122 = por %p120, %p121
      %p123 = scmp.ne.s32.totalorder %s115, %s118
      %p124 = scmp.eq.s32.totalorder %s16, 0
      %p125 = por %p123, %p124
      %p126 = scmp.ne.s32.totalorder %s115, %s118
      %p127 = scmp.eq.s32.totalorder %s21, 1
      %p128 = por %p126, %p127
      %p129 = scmp.ne.s32.totalorder %s118, %s119
      %p130 = scmp.eq.s32.totalorder %s21, 0
      %p131 = por %p129, %p130
      %p132 = scmp.ne.s32.totalorder %s118, %s119
      %p133 = scmp.eq.s32.totalorder %s22, 1
      %p134 = por %p132, %p133
      %p136 = scmp.ne.s32.totalorder %s119, %s135
      %p137 = scmp.eq.s32.totalorder %s22, 0
      %p138 = por %p136, %p137
      %p139 = scmp.le.s32.totalorder 1, %s16
      %p140 = scmp.lt.s32.totalorder %s16, 3
      %p141 = pnand %p139, %p140
      %p142 = pneg %p141
      // Predicated region
      $region9: #{tpu_custom_call.1} parent=5 // pred_check
        _
      $region10: #{tpu_custom_call.1} parent=5 // pred_check_branch
        %144 = sbr.rel (%p141) target = $region12
      $region11: #{tpu_custom_call.1} parent=5 // pred_region
        %s145 = ssub.s32 %s16, 1
        // Predicated region
        $region13: #{tpu_custom_call.1} parent=11 // pred_check
          %p146 = pneg %p63
        $region14: #{tpu_custom_call.1} parent=11 // pred_check_branch
          %148 = sbr.rel (%p146) target = $region16
        $region15: #{tpu_custom_call.1} parent=11 // pred_region
          _
        $region16: #{tpu_custom_call.1} parent=11 // pred_fallthru
          _
        // Predicated region
        $region17: #{tpu_custom_call.1} parent=11 // pred_check
          %p149 = pneg %p84
        $region18: #{tpu_custom_call.1} parent=11 // pred_check_branch
          %151 = sbr.rel (%p149) target = $region20
        $region19: #{tpu_custom_call.1} parent=11 // pred_region
          _
        $region20: #{tpu_custom_call.1} parent=11 // pred_fallthru
          _
        // Predicated region
        $region21: #{tpu_custom_call.1} parent=11 // pred_check
          %p152 = pneg %p105
        $region22: #{tpu_custom_call.1} parent=11 // pred_check_branch
          %154 = sbr.rel (%p152) target = $region24
        $region23: #{tpu_custom_call.1} parent=11 // pred_region
          _
        $region24: #{tpu_custom_call.1} parent=11 // pred_fallthru
          _
      $region12: #{tpu_custom_call.1} parent=5 // pred_fallthru
        _
      %p155 = scmp.lt.s32.totalorder %s16, 2
      // Predicated region
      $region25: #{tpu_custom_call.1} parent=5 // pred_check
        %p156 = pneg %p155
      $region26: #{tpu_custom_call.1} parent=5 // pred_check_branch
        %158 = sbr.rel (%p156) target = $region28
      $region27: #{tpu_custom_call.1} parent=5 // pred_region
        // Predicated region
        $region29: #{tpu_custom_call.1} parent=27 // pred_check
          %p159 = pneg %p36
        $region30: #{tpu_custom_call.1} parent=27 // pred_check_branch
          %161 = sbr.rel (%p159) target = $region32
        $region31: #{tpu_custom_call.1} parent=27 // pred_region
          %s162 = sand.u32 %s26, 1
          %s163 = scalar_lea.sflag [#allocation3], %s162
          %s164 = sand.u32 %s26, 1
          %s165 = smul.addr %s164, 256
          %s166 = scalar_lea.vmem [#allocation2], %s165
          %s168 = ssub.s32 4096, 4096
          %169 = vsyncadd %s163, %s168
          %s170 = smul.addr %s16, 32
          %s171 = smul.addr %s170, 128
          %s172 = scalar_lea.hbm %s0, %s171
          %s173 = sshll.u32 %s166, 4
          %s174 = int_to_ptr.vmem [resolvable:$true] %s173
          %179 = dma.hbm_to_vmem [thread:$0]  %s172, 4096, %s174, %s163, 256, 256, 16
        $region32: #{tpu_custom_call.1} parent=27 // pred_fallthru
          _
      $region28: #{tpu_custom_call.1} parent=5 // pred_fallthru
        _
      %p180 = scmp.le.s32.totalorder 1, %s16
      %p181 = scmp.lt.s32.totalorder %s16, 3
      %p182 = pnand %p180, %p181
      %p183 = pneg %p182
      // Predicated region
      $region33: #{tpu_custom_call.1} parent=5 // pred_check
        _
      $region34: #{tpu_custom_call.1} parent=5 // pred_check_branch
        %185 = sbr.rel (%p182) target = $region36
      $region35: #{tpu_custom_call.1} parent=5 // pred_region
        %s186 = ssub.s32 %s16, 1
        %s187 = sand.u32 %s29, 1
        %s188 = scalar_lea.sflag [#allocation3], %s187
        %s189 = sand.u32 %s29, 1
        %s190 = smul.addr %s189, 256
        %s191 = scalar_lea.vmem [#allocation2], %s190
        // Predicated region
        $region37: #{tpu_custom_call.1} parent=35 // pred_check
          %p192 = pneg %p42
        $region38: #{tpu_custom_call.1} parent=35 // pred_check_branch
          %194 = sbr.rel (%p192) target = $region40
        $region39: #{tpu_custom_call.1} parent=35 // pred_region
          %195 = dma.done %s188, 4096
        $region40: #{tpu_custom_call.1} parent=35 // pred_fallthru
          _
        %s196 = sand.u32 %s29, 1
        %s197 = scalar_lea.sflag [#allocation3], %s196
        %s198 = sand.u32 %s29, 1
        %s199 = smul.addr %s198, 256
        %s200 = scalar_lea.vmem [#allocation2], %s199
        %p201 = pneg %p42
        %p202 = pneg %p39
        %p203 = pneg %p63
        %p204 = pneg %p60
        %p205 = pneg %p84
        %p206 = pneg %p81
        %p207 = pneg %p105
        %p208 = pneg %p102
        %p209 = pneg %p131
        %p210 = pneg %p128
        %s211 = sand.u32 %s118, 1
        %s212 = scalar_lea.sflag [#allocation4], %s211
        %s213 = sand.u32 %s118, 1
        %s214 = smul.addr %s213, 16
        %s215 = scalar_lea.vmem [#allocation5], %s214
        %v216 = vld [vmem:[%s191] sm:$0xff]
        %v217 = vld [vmem:[%s191 + $0x8] sm:$0xff]
        %v218 = vld [vmem:[%s191 + $0x10] sm:$0xff]
        %v219 = vld [vmem:[%s191 + $0x18] sm:$0xff]
        %v220 = vld [vmem:[%s191 + $0x20] sm:$0xff]
        %v221 = vld [vmem:[%s191 + $0x28] sm:$0xff]
        %v222 = vld [vmem:[%s191 + $0x30] sm:$0xff]
        %v223 = vld [vmem:[%s191 + $0x38] sm:$0xff]
        %v224 = vld [vmem:[%s191 + $0x40] sm:$0xff]
        %v225 = vld [vmem:[%s191 + $0x48] sm:$0xff]
        %v226 = vld [vmem:[%s191 + $0x50] sm:$0xff]
        %v227 = vld [vmem:[%s191 + $0x58] sm:$0xff]
        %v228 = vld [vmem:[%s191 + $0x60] sm:$0xff]
        %v229 = vld [vmem:[%s191 + $0x68] sm:$0xff]
        %v230 = vld [vmem:[%s191 + $0x70] sm:$0xff]
        %v231 = vld [vmem:[%s191 + $0x78] sm:$0xff]
        %v232 = vld [vmem:[%s191 + $0x80] sm:$0xff]
        %v233 = vld [vmem:[%s191 + $0x88] sm:$0xff]
        %v234 = vld [vmem:[%s191 + $0x90] sm:$0xff]
        %v235 = vld [vmem:[%s191 + $0x98] sm:$0xff]
        %v236 = vld [vmem:[%s191 + $0xa0] sm:$0xff]
        %v237 = vld [vmem:[%s191 + $0xa8] sm:$0xff]
        %v238 = vld [vmem:[%s191 + $0xb0] sm:$0xff]
        %v239 = vld [vmem:[%s191 + $0xb8] sm:$0xff]
        %v240 = vld [vmem:[%s191 + $0xc0] sm:$0xff]
        %v241 = vld [vmem:[%s191 + $0xc8] sm:$0xff]
        %v242 = vld [vmem:[%s191 + $0xd0] sm:$0xff]
        %v243 = vld [vmem:[%s191 + $0xd8] sm:$0xff]
        %v244 = vld [vmem:[%s191 + $0xe0] sm:$0xff]
        %v245 = vld [vmem:[%s191 + $0xe8] sm:$0xff]
        %v246 = vld [vmem:[%s191 + $0xf0] sm:$0xff]
        %v247 = vld [vmem:[%s191 + $0xf8] sm:$0xff]
        %v248 = vld [vmem:[%s1] sm:$0xff]
        %249 = vmatprep.subr.mxu0 %v247
        %250 = vmatpush1.msra.mxu0 %v246
        %251 = vmatprep.subr.mxu0 %v245
        %252 = vmatpush1.msra.mxu0 %v244
        %253 = vmatprep.subr.mxu0 %v243
        %254 = vmatpush1.msra.mxu0 %v242
        %255 = vmatprep.subr.mxu0 %v241
        %256 = vmatpush1.msra.mxu0 %v240
        %257 = vmatprep.subr.mxu0 %v239
        %258 = vmatpush1.msra.mxu0 %v238
        %259 = vmatprep.subr.mxu0 %v237
        %260 = vmatpush1.msra.mxu0 %v236
        %261 = vmatprep.subr.mxu0 %v235
        %262 = vmatpush1.msra.mxu0 %v234
        %263 = vmatprep.subr.mxu0 %v233
        %264 = vmatpush1.msra.mxu0 %v232
        %265 = vmatprep.subr.mxu0 %v231
        %266 = vmatpush1.msra.mxu0 %v230
        %267 = vmatprep.subr.mxu0 %v229
        %268 = vmatpush1.msra.mxu0 %v228
        %269 = vmatprep.subr.mxu0 %v227
        %270 = vmatpush1.msra.mxu0 %v226
        %271 = vmatprep.subr.mxu0 %v225
        %272 = vmatpush1.msra.mxu0 %v224
        %273 = vmatprep.subr.mxu0 %v223
        %274 = vmatpush1.msra.mxu0 %v222
        %275 = vmatprep.subr.mxu0 %v221
        %276 = vmatpush1.msra.mxu0 %v220
        %277 = vmatprep.subr.mxu0 %v219
        %278 = vmatpush1.msra.mxu0 %v218
        %279 = vmatprep.subr.mxu0 %v217
        %280 = vmatpush1.msra.mxu0 %v216
        %281 = vmatprep.subr.mxu0 0.0
        %282 = vmatpush2.msra.mxu0 0.0
        %283 = vmatprep.subr.mxu0 0.0
        %284 = vmatpush2.msra.mxu0 0.0
        %285 = vmatprep.subr.mxu0 0.0
        %286 = vmatpush2.msra.mxu0 0.0
        %287 = vmatprep.subr.mxu0 0.0
        %288 = vmatpush2.msra.mxu0 0.0
        %289 = vmatprep.subr.mxu0 0.0
        %290 = vmatpush2.msra.mxu0 0.0
        %291 = vmatprep.subr.mxu0 0.0
        %292 = vmatpush2.msra.mxu0 0.0
        %293 = vmatprep.subr.mxu0 0.0
        %294 = vmatpush2.msra.mxu0 0.0
        %295 = vmatprep.subr.mxu0 0.0
        %296 = vmatpush2.msra.mxu0 0.0
        %297 = vmatprep.subr.mxu0 0.0
        %298 = vmatpush2.msra.mxu0 0.0
        %299 = vmatprep.subr.mxu0 0.0
        %300 = vmatpush2.msra.mxu0 0.0
        %301 = vmatprep.subr.mxu0 0.0
        %302 = vmatpush2.msra.mxu0 0.0
        %303 = vmatprep.subr.mxu0 0.0
        %304 = vmatpush2.msra.mxu0 0.0
        %305 = vmatprep.subr.mxu0 0.0
        %306 = vmatpush2.msra.mxu0 0.0
        %307 = vmatprep.subr.mxu0 0.0
        %308 = vmatpush2.msra.mxu0 0.0
        %309 = vmatprep.subr.mxu0 0.0
        %310 = vmatpush2.msra.mxu0 0.0
        %311 = vmatprep.subr.mxu0 0.0
        %312 = vmatpush2.msra.mxu0 0.0
        %313 = vmatprep.mubr.f32.mxu0 0.0
        %314 = vmatmul.mubr.f32.gmra.mxu0 %v248
        %v315 = vpop.f32.mrf.mxu0
        %v316 = vadd.f32 0.0, %v315
        %v317 = vpop.f32.mrf.mxu0
        %v318 = vadd.f32 0.0, %v317
        %319 = vdwg.mxu0
        %v320 = vadd.f32 %v316, %v318
        %321 = vadd.xlane.f32.xlu0 %v320
        %v322 = vpop.xlane.xlu0 %321
        %v323 = vrot.slane %v322, 4
        %v324 = vadd.f32 %v322, %v323
        %v325 = vrot.slane %v324, 2
        %v326 = vadd.f32 %v324, %v325
        %v327 = vrot.slane %v326, 1
        %v328 = vadd.f32 %v326, %v327
        %s329 = vtos %v328
        %v330 = vmul.f32 %v316, %v316
        %v331 = vmul.f32 %v318, %v318
        %v332 = vadd.f32 %v330, %v331
        %333 = vadd.xlane.f32.xlu0 %v332
        %v334 = vpop.xlane.xlu0 %333
        %v335 = vrot.slane %v334, 4
        %v336 = vadd.f32 %v334, %v335
        %v337 = vrot.slane %v336, 2
        %v338 = vadd.f32 %v336, %v337
        %v339 = vrot.slane %v338, 1
        %v340 = vadd.f32 %v338, %v339
        %s341 = vtos %v340
        %s342 = smul.f32 %s329, 0.00048828125
        %s343 = smul.f32 %s341, 0.00048828125
        %s344 = smul.f32 %s342, %s342
        %s345 = ssub.f32 %s343, %s344
        %v346 = vld [vmem:[%s2] sm:$0xff]
        %s347 = sadd.f32 %s345, 1e-05
        %v348 = vstv %s347
        %v349 = vrsqrt.pop %v348
        %s350 = vtos %v349
        %v351 = vstv %s350
        %v352 = vmul.f32 %v346, %v351
        %v353 = vld [vmem:[%s3] sm:$0xff]
        %v354 = vstv %s342
        %v355 = vmul.f32 %v354, %v352
        %v356 = vsub.f32 %v353, %v355
        %358 = vset.pattern.permute.xlu0 0
        %359 = vperm.xlu0 %358, %v352
        %v360 = vpop.permute.xlu0 %359
        %v362 = vmul.f32 %v316, %v360
        %v363 = vmul.f32 %v318, %v360
        %365 = vset.pattern.permute.xlu0 0
        %366 = vperm.xlu0 %365, %v356
        %v367 = vpop.permute.xlu0 %366
        %v369 = vadd.f32 %v362, %v367
        %v370 = vadd.f32 %v363, %v367
        %v371 = vmax.f32 %v369, 0.0
        %v372 = vmax.f32 %v370, 0.0
        %373 = vst [vmem:[%s215] sm:$0xff] %v371
        %374 = vst [vmem:[%s215 + $0x8] sm:$0xff] %v372
        %s375 = sand.u32 %s118, 1
        %s376 = scalar_lea.sflag [#allocation4], %s375
        %s377 = sand.u32 %s118, 1
        %s378 = smul.addr %s377, 16
        %s379 = scalar_lea.vmem [#allocation5], %s378
        // Predicated region
        $region41: #{tpu_custom_call.1} parent=35 // pred_check
          %p380 = pneg %p128
        $region42: #{tpu_custom_call.1} parent=35 // pred_check_branch
          %382 = sbr.rel (%p380) target = $region44
        $region43: #{tpu_custom_call.1} parent=35 // pred_region
          %s384 = ssub.s32 256, 256
          %385 = vsyncadd %s376, %s384
          %s386 = smul.addr %s21, 2
          %s387 = smul.addr %s386, 128
          %s388 = scalar_lea.hbm %s4, %s387
          %s390 = sshll.u32 %s379, 4
          %s391 = int_to_ptr.vmem [resolvable:$true] %s390
          %393 = dma.vmem_to_hbm [thread:$0]  %s391, 256, %s388, %s376
        $region44: #{tpu_custom_call.1} parent=35 // pred_fallthru
          _
      $region36: #{tpu_custom_call.1} parent=5 // pred_fallthru
        _
      %p394 = scmp.le.s32.totalorder 2, %s16
      // Predicated region
      $region45: #{tpu_custom_call.1} parent=5 // pred_check
        %p395 = pneg %p394
      $region46: #{tpu_custom_call.1} parent=5 // pred_check_branch
        %397 = sbr.rel (%p395) target = $region48
      $region47: #{tpu_custom_call.1} parent=5 // pred_region
        %s398 = ssub.s32 %s16, 2
        // Predicated region
        $region49: #{tpu_custom_call.1} parent=47 // pred_check
          %p399 = pneg %p134
        $region50: #{tpu_custom_call.1} parent=47 // pred_check_branch
          %401 = sbr.rel (%p399) target = $region52
        $region51: #{tpu_custom_call.1} parent=47 // pred_region
          %s402 = sand.u32 %s119, 1
          %s403 = scalar_lea.sflag [#allocation4], %s402
          %s404 = sand.u32 %s119, 1
          %s405 = smul.addr %s404, 16
          %s406 = scalar_lea.vmem [#allocation5], %s405
          %407 = dma.done %s403, 256
        $region52: #{tpu_custom_call.1} parent=47 // pred_fallthru
          _
      $region48: #{tpu_custom_call.1} parent=5 // pred_fallthru
        _
    $region6: #{tpu_custom_call.1} parent=1 // loop_footer
      %s20 = sadd.s32 1, %s16
    $region7: #{tpu_custom_call.1} parent=1 // loop_footer_branch
      %15 = sbr.rel target = $region3
    $region8: #{tpu_custom_call.1} parent=1 // loop_exit
      _
    %408 = vsyncpa [#allocation3], 1
    %s409 = scalar_lea.sflag [#allocation3], 1
    %410 = vsyncpa %s409, 1
    %411 = vsyncpa [#allocation4], 1
    %s412 = scalar_lea.sflag [#allocation4], 1
    %413 = vsyncpa %s412, 1

</llo_original>
